<compile_context>
chip_gen: v6e
topology: v6e:2x2x1
jax: 0.10.0
libtpu: 0.0.40
codegen_flags: <defaults>
</compile_context>

<pallas_src>
import jax
import jax.numpy as jnp
from jax import lax
from jax.experimental import pallas as pl
from jax.experimental.pallas import tpu as pltpu

NEG_SLOPE = 0.01          # PyTorch nn.LeakyReLU() default
DEFAULT_TILE_B = 1024     # rows per grid step (review: 1024-4096 range)

# dot_general dimension numbers for A (m,k) x B (n,k) -> (m,n), i.e. A @ B.T
TRANS_B_DIM_NUMBERS = (((1,), (1,)), ((), ()))


def _leaky_relu(x):
    return jnp.where(x > 0, x, NEG_SLOPE * x)


def _round_up(x, m):
    return (x + m - 1) // m * m


def rsnnd_kernel(u_ref, i_ref,
                 w1u_ref, w1i_ref, b1_ref,
                 w2_ref, b2_ref,
                 mw1_ref, mb1_ref,
                 mw2_ref, mb2_ref,
                 mw3p_ref, gwp_ref, b3_ref,
                 fwt_ref, fb_ref,
                 out_ref):
    f32 = jnp.float32
    # bf16 (or f32) inputs -> f32 right after load (v5e VPU has no bf16 path).
    u = u_ref[...].astype(f32)
    i = i_ref[...].astype(f32)

    # Fused user/item towers, layer 1: [u|i] @ blockdiag(uw1, iw1) realized as
    # column-padded halves, so u and i stream independently (no input concat /
    # extra HBM round-trip).  -> (T, 64)
    a1 = _leaky_relu(jnp.dot(u, w1u_ref[...], preferred_element_type=f32)
                     + jnp.dot(i, w1i_ref[...], preferred_element_type=f32)
                     + b1_ref[...])
    # Fused towers, layer 2: block-diagonal (64, 64).  a2 = [uembd | iembd].
    a2 = _leaky_relu(jnp.dot(a1, w2_ref[...], preferred_element_type=f32)
                     + b2_ref[...])

    # MLP branch: layer 1 consumes the fused 64-lane activation with the full mw1
    # (torch.cat([uembd, iembd], dim=1) is already materialized in a2).
    x = _leaky_relu(jnp.dot(a2, mw1_ref[...], preferred_element_type=f32)
                    + mb1_ref[...])
    x = _leaky_relu(jnp.dot(x, mw2_ref[...], preferred_element_type=f32)
                    + mb2_ref[...])

    # GMF product uembd * iembd via cheap sub-vreg lane selects of the fused act.
    # NOTE: a2 * pltpu.roll(a2, 32, axis=1) is an equivalent XLU-slot formulation.
    g = a2[:, :32] * a2[:, 32:]

    # Fused tail: [mlp layer 3 | gmf layer] as column-padded (32, 16) weights, one
    # LeakyReLU over the 16-lane result (== torch.cat([x, y], dim=1)).
    h = _leaky_relu(jnp.dot(x, mw3p_ref[...], preferred_element_type=f32)
                    + jnp.dot(g, gwp_ref[...], preferred_element_type=f32)
                    + b3_ref[...])

    # Final 16 -> 1 layer, computed lane-dense:  fw^T (1,16) x h^T -> (1, T) so the
    # output store/DMA is a dense 128-lane row instead of a (T, 1) column.
    pred = lax.dot_general(fwt_ref[...], h, TRANS_B_DIM_NUMBERS,
                           preferred_element_type=f32) + fb_ref[...]
    out_ref[...] = pred[None]        # (1, 1, T)


def rsnnd_forward(u, i, packed_params, *, tile_b=DEFAULT_TILE_B):
    """Full rsNND forward: u (B, dim_u), i (B, dim_i) -> (B, 1) float32."""
    assert u.shape[0] == i.shape[0]
    B = u.shape[0]
    tb = min(_round_up(tile_b, 8), _round_up(B, 8))
    Bp = _round_up(B, tb)
    if Bp != B:
        u = jnp.pad(u, ((0, Bp - B), (0, 0)))
        i = jnp.pad(i, ((0, Bp - B), (0, 0)))
    n_tiles = Bp // tb
    du, di = u.shape[1], i.shape[1]

    def streamed(feat):
        # One (tb, feat) tile per grid step -> Pallas double-buffers the DMA.
        return pl.BlockSpec((tb, feat), lambda b: (b, 0))

    def resident(p):
        # Constant index_map: weight/bias is copied into VMEM once and stays there.
        return pl.BlockSpec(p.shape, lambda b: (0,) * p.ndim)

    out = pl.pallas_call(
        rsnnd_kernel,
        out_shape=jax.ShapeDtypeStruct((n_tiles, 1, tb), jnp.float32),
        grid=(n_tiles,),
        in_specs=[streamed(du), streamed(di)] + [resident(p) for p in packed_params],
        out_specs=pl.BlockSpec((1, 1, tb), lambda b: (b, 0, 0)),
        compiler_params=pltpu.CompilerParams(
            # batch axis can be split across the two v7x TensorCores; neutral on
            # v5e/v6e.  Working set is tiny, so no explicit vmem_limit_bytes needed
            # even on v7x's 64 MiB VMEM.
            dimension_semantics=("parallel",),
        ),
    )(u, i, *packed_params)
    return out.reshape(-1)[:B].reshape(B, 1)


def init_raw_params(key, dim_u, dim_i):
    """Deterministic synthetic parameters matching rsNND.__init__ shapes.

    Weights are stored as (in, out) (PyTorch W.T); biases as (1, out).
    """
    ks = jax.random.split(key, 17)

    def w(k, fi, fo):
        return jax.random.normal(k, (fi, fo), jnp.float32) * 0.1

    def b(k, fo):
        return jax.random.normal(k, (1, fo), jnp.float32) * 0.1

    return dict(
        uw1=w(ks[0], dim_u, 32), ub1=b(ks[1], 32),
        uw2=w(ks[2], 32, 32),    ub2=b(ks[3], 32),
        iw1=w(ks[4], dim_i, 32), ib1=b(ks[5], 32),
        iw2=w(ks[6], 32, 32),    ib2=b(ks[7], 32),
        mw1=w(ks[8], 64, 64),    mb1=b(ks[9], 64),
        mw2=w(ks[10], 64, 32),   mb2=b(ks[11], 32),
        mw3=w(ks[12], 32, 8),    mb3=b(ks[13], 8),
        gw=w(ks[14], 32, 8),                      # gmf_Layer: bias=False
        fw=w(ks[15], 16, 1),     fb=b(ks[16], 1),
    )


def pack_params(raw):
    """Fold concats/towers into block-diagonal / column-padded kernel weights."""
    f32 = jnp.float32
    du = raw['uw1'].shape[0]
    di = raw['iw1'].shape[0]
    # tower layer 1: column-padded halves of blockdiag(uw1, iw1) -> (du,64)/(di,64)
    w1u = jnp.zeros((du, 64), f32).at[:, :32].set(raw['uw1'])
    w1i = jnp.zeros((di, 64), f32).at[:, 32:].set(raw['iw1'])
    b1 = jnp.concatenate([raw['ub1'], raw['ib1']], axis=1)
    # tower layer 2: block-diagonal (64, 64)
    w2 = (jnp.zeros((64, 64), f32)
          .at[:32, :32].set(raw['uw2'])
          .at[32:, 32:].set(raw['iw2']))
    b2 = jnp.concatenate([raw['ub2'], raw['ib2']], axis=1)
    # fused tail: [mlp W3 | gmf W] column-padded to 16 output lanes
    mw3p = jnp.zeros((32, 16), f32).at[:, :8].set(raw['mw3'])
    gwp = jnp.zeros((32, 16), f32).at[:, 8:].set(raw['gw'])
    b3 = jnp.concatenate([raw['mb3'], jnp.zeros((1, 8), f32)], axis=1)
    # final layer stored transposed (1, 16) for the lane-dense trans-B dot
    fwt = raw['fw'].T
    return (w1u, w1i, b1, w2, b2,
            raw['mw1'], raw['mb1'], raw['mw2'], raw['mb2'],
            mw3p, gwp, b3, fwt, raw['fb'])


def rsnnd_reference(u, i, raw):
    """Pure-JAX reference mirroring the PyTorch forward (unfused weights)."""
    lr = _leaky_relu
    ue = lr(u @ raw['uw1'] + raw['ub1'])
    ue = lr(ue @ raw['uw2'] + raw['ub2'])
    ie = lr(i @ raw['iw1'] + raw['ib1'])
    ie = lr(ie @ raw['iw2'] + raw['ib2'])
    x = jnp.concatenate([ue, ie], axis=1)
    x = lr(x @ raw['mw1'] + raw['mb1'])
    x = lr(x @ raw['mw2'] + raw['mb2'])
    x = lr(x @ raw['mw3'] + raw['mb3'])
    y = lr((ue * ie) @ raw['gw'])
    nmf = jnp.concatenate([x, y], axis=1)
    return nmf @ raw['fw'] + raw['fb']


if __name__ == "__main__":
    key = jax.random.PRNGKey(0)
    k_u, k_i, k_p = jax.random.split(key, 3)

    B = 8
    DIM_U_FEATURE = 16
    DIM_I_FEATURE = 24

    u = jax.random.normal(k_u, (B, DIM_U_FEATURE), jnp.float32)
    i = jax.random.normal(k_i, (B, DIM_I_FEATURE), jnp.float32)

    raw = init_raw_params(k_p, DIM_U_FEATURE, DIM_I_FEATURE)
    packed = pack_params(raw)

    # Stream the (dominant) activations as bf16; weights stay f32 (DMA'd once).
    u_bf16 = u.astype(jnp.bfloat16)
    i_bf16 = i.astype(jnp.bfloat16)

    pred = rsnnd_forward(u_bf16, i_bf16, packed)
    jax.block_until_ready(pred)

    # Reference evaluated on the same bf16-rounded inputs, so only kernel
    # structure (fused weights, f32 compute) differs.
    ref = rsnnd_reference(u_bf16.astype(jnp.float32),
                          i_bf16.astype(jnp.float32), raw)
    assert pred.shape == (B, 1), pred.shape
    assert jnp.allclose(pred, ref, atol=2e-4, rtol=1e-2), (pred, ref)

    print("KERNEL_OK")
</pallas_src>

<mosaic_0001>
module attributes {stable_mosaic.version = 11 : i64} {
  func.func @rsnnd_kernel(%arg0: i32, %arg1: memref<8x16xbf16, #tpu.memory_space<vmem>>, %arg2: memref<8x24xbf16, #tpu.memory_space<vmem>>, %arg3: memref<16x64xf32, #tpu.memory_space<vmem>>, %arg4: memref<24x64xf32, #tpu.memory_space<vmem>>, %arg5: memref<1x64xf32, #tpu.memory_space<vmem>>, %arg6: memref<64x64xf32, #tpu.memory_space<vmem>>, %arg7: memref<1x64xf32, #tpu.memory_space<vmem>>, %arg8: memref<64x64xf32, #tpu.memory_space<vmem>>, %arg9: memref<1x64xf32, #tpu.memory_space<vmem>>, %arg10: memref<64x32xf32, #tpu.memory_space<vmem>>, %arg11: memref<1x32xf32, #tpu.memory_space<vmem>>, %arg12: memref<32x16xf32, #tpu.memory_space<vmem>>, %arg13: memref<32x16xf32, #tpu.memory_space<vmem>>, %arg14: memref<1x16xf32, #tpu.memory_space<vmem>>, %arg15: memref<1x16xf32, #tpu.memory_space<vmem>>, %arg16: memref<1x1xf32, #tpu.memory_space<vmem>>, %arg17: memref<1x1x8xf32, #tpu.memory_space<vmem>>) attributes {dimension_semantics = [#tpu.dimension_semantics<parallel>], iteration_bounds = array<i64: 1>, scalar_prefetch = 0 : i64, scratch_operands = 0 : i64, tpu.core_type = #tpu.core_type<tc>, window_params = [{transform_indices = @transform_0, window_bounds = array<i64: 8, 16>}, {transform_indices = @transform_1, window_bounds = array<i64: 8, 24>}, {pipeline_mode = #tpu.pipeline_mode<synchronous>, transform_indices = @transform_2, window_bounds = array<i64: 16, 64>}, {pipeline_mode = #tpu.pipeline_mode<synchronous>, transform_indices = @transform_3, window_bounds = array<i64: 24, 64>}, {pipeline_mode = #tpu.pipeline_mode<synchronous>, transform_indices = @transform_4, window_bounds = array<i64: 1, 64>}, {pipeline_mode = #tpu.pipeline_mode<synchronous>, transform_indices = @transform_5, window_bounds = array<i64: 64, 64>}, {pipeline_mode = #tpu.pipeline_mode<synchronous>, transform_indices = @transform_6, window_bounds = array<i64: 1, 64>}, {pipeline_mode = #tpu.pipeline_mode<synchronous>, transform_indices = @transform_7, window_bounds = array<i64: 64, 64>}, {pipeline_mode = #tpu.pipeline_mode<synchronous>, transform_indices = @transform_8, window_bounds = array<i64: 1, 64>}, {pipeline_mode = #tpu.pipeline_mode<synchronous>, transform_indices = @transform_9, window_bounds = array<i64: 64, 32>}, {pipeline_mode = #tpu.pipeline_mode<synchronous>, transform_indices = @transform_10, window_bounds = array<i64: 1, 32>}, {pipeline_mode = #tpu.pipeline_mode<synchronous>, transform_indices = @transform_11, window_bounds = array<i64: 32, 16>}, {pipeline_mode = #tpu.pipeline_mode<synchronous>, transform_indices = @transform_12, window_bounds = array<i64: 32, 16>}, {pipeline_mode = #tpu.pipeline_mode<synchronous>, transform_indices = @transform_13, window_bounds = array<i64: 1, 16>}, {pipeline_mode = #tpu.pipeline_mode<synchronous>, transform_indices = @transform_14, window_bounds = array<i64: 1, 16>}, {pipeline_mode = #tpu.pipeline_mode<synchronous>, transform_indices = @transform_15, window_bounds = array<i64: 1, 1>}, {transform_indices = @transform_16, window_bounds = array<i64: 1, 1, 8>}]} {
    %c0 = arith.constant 0 : index
    %c0_0 = arith.constant 0 : index
    %0 = vector.load %arg1[%c0, %c0_0] : memref<8x16xbf16, #tpu.memory_space<vmem>>, vector<8x16xbf16>
    %1 = arith.extf %0 : vector<8x16xbf16> to vector<8x16xf32>
    %c0_1 = arith.constant 0 : index
    %c0_2 = arith.constant 0 : index
    %2 = vector.load %arg2[%c0_1, %c0_2] : memref<8x24xbf16, #tpu.memory_space<vmem>>, vector<8x24xbf16>
    %3 = arith.extf %2 : vector<8x24xbf16> to vector<8x24xf32>
    %c0_3 = arith.constant 0 : index
    %c0_4 = arith.constant 0 : index
    %4 = vector.load %arg3[%c0_3, %c0_4] : memref<16x64xf32, #tpu.memory_space<vmem>>, vector<16x64xf32>
    %cst = arith.constant dense<0.000000e+00> : vector<8x64xf32>
    %5 = tpu.matmul %1, %4, %cst {dimension_numbers = #tpu.dot_dimension_numbers<[1], [0], [0], [1], [0, 0, 1, 1], [], []>} : vector<8x16xf32>, vector<16x64xf32>, vector<8x64xf32> -> vector<8x64xf32>
    %c0_5 = arith.constant 0 : index
    %c0_6 = arith.constant 0 : index
    %6 = vector.load %arg4[%c0_5, %c0_6] : memref<24x64xf32, #tpu.memory_space<vmem>>, vector<24x64xf32>
    %cst_7 = arith.constant dense<0.000000e+00> : vector<8x64xf32>
    %7 = tpu.matmul %3, %6, %cst_7 {dimension_numbers = #tpu.dot_dimension_numbers<[1], [0], [0], [1], [0, 0, 1, 1], [], []>} : vector<8x24xf32>, vector<24x64xf32>, vector<8x64xf32> -> vector<8x64xf32>
    %8 = arith.addf %5, %7 : vector<8x64xf32>
    %c0_8 = arith.constant 0 : index
    %c0_9 = arith.constant 0 : index
    %9 = vector.load %arg5[%c0_8, %c0_9] : memref<1x64xf32, #tpu.memory_space<vmem>>, vector<1x64xf32>
    %10 = vector.broadcast %9 : vector<1x64xf32> to vector<8x64xf32>
    %11 = arith.addf %8, %10 : vector<8x64xf32>
    %cst_10 = arith.constant 0.000000e+00 : f32
    %12 = vector.broadcast %cst_10 : f32 to vector<8x64xf32>
    %13 = arith.cmpf ogt, %11, %12 : vector<8x64xf32>
    %cst_11 = arith.constant 0.00999999977 : f32
    %14 = vector.broadcast %cst_11 : f32 to vector<8x64xf32>
    %15 = arith.mulf %14, %11 : vector<8x64xf32>
    %16 = arith.select %13, %11, %15 : vector<8x64xi1>, vector<8x64xf32>
    %c0_12 = arith.constant 0 : index
    %c0_13 = arith.constant 0 : index
    %17 = vector.load %arg6[%c0_12, %c0_13] : memref<64x64xf32, #tpu.memory_space<vmem>>, vector<64x64xf32>
    %cst_14 = arith.constant dense<0.000000e+00> : vector<8x64xf32>
    %18 = tpu.matmul %16, %17, %cst_14 {dimension_numbers = #tpu.dot_dimension_numbers<[1], [0], [0], [1], [0, 0, 1, 1], [], []>} : vector<8x64xf32>, vector<64x64xf32>, vector<8x64xf32> -> vector<8x64xf32>
    %c0_15 = arith.constant 0 : index
    %c0_16 = arith.constant 0 : index
    %19 = vector.load %arg7[%c0_15, %c0_16] : memref<1x64xf32, #tpu.memory_space<vmem>>, vector<1x64xf32>
    %20 = vector.broadcast %19 : vector<1x64xf32> to vector<8x64xf32>
    %21 = arith.addf %18, %20 : vector<8x64xf32>
    %cst_17 = arith.constant 0.000000e+00 : f32
    %22 = vector.broadcast %cst_17 : f32 to vector<8x64xf32>
    %23 = arith.cmpf ogt, %21, %22 : vector<8x64xf32>
    %cst_18 = arith.constant 0.00999999977 : f32
    %24 = vector.broadcast %cst_18 : f32 to vector<8x64xf32>
    %25 = arith.mulf %24, %21 : vector<8x64xf32>
    %26 = arith.select %23, %21, %25 : vector<8x64xi1>, vector<8x64xf32>
    %c0_19 = arith.constant 0 : index
    %c0_20 = arith.constant 0 : index
    %27 = vector.load %arg8[%c0_19, %c0_20] : memref<64x64xf32, #tpu.memory_space<vmem>>, vector<64x64xf32>
    %cst_21 = arith.constant dense<0.000000e+00> : vector<8x64xf32>
    %28 = tpu.matmul %26, %27, %cst_21 {dimension_numbers = #tpu.dot_dimension_numbers<[1], [0], [0], [1], [0, 0, 1, 1], [], []>} : vector<8x64xf32>, vector<64x64xf32>, vector<8x64xf32> -> vector<8x64xf32>
    %c0_22 = arith.constant 0 : index
    %c0_23 = arith.constant 0 : index
    %29 = vector.load %arg9[%c0_22, %c0_23] : memref<1x64xf32, #tpu.memory_space<vmem>>, vector<1x64xf32>
    %30 = vector.broadcast %29 : vector<1x64xf32> to vector<8x64xf32>
    %31 = arith.addf %28, %30 : vector<8x64xf32>
    %cst_24 = arith.constant 0.000000e+00 : f32
    %32 = vector.broadcast %cst_24 : f32 to vector<8x64xf32>
    %33 = arith.cmpf ogt, %31, %32 : vector<8x64xf32>
    %cst_25 = arith.constant 0.00999999977 : f32
    %34 = vector.broadcast %cst_25 : f32 to vector<8x64xf32>
    %35 = arith.mulf %34, %31 : vector<8x64xf32>
    %36 = arith.select %33, %31, %35 : vector<8x64xi1>, vector<8x64xf32>
    %c0_26 = arith.constant 0 : index
    %c0_27 = arith.constant 0 : index
    %37 = vector.load %arg10[%c0_26, %c0_27] : memref<64x32xf32, #tpu.memory_space<vmem>>, vector<64x32xf32>
    %cst_28 = arith.constant dense<0.000000e+00> : vector<8x32xf32>
    %38 = tpu.matmul %36, %37, %cst_28 {dimension_numbers = #tpu.dot_dimension_numbers<[1], [0], [0], [1], [0, 0, 1, 1], [], []>} : vector<8x64xf32>, vector<64x32xf32>, vector<8x32xf32> -> vector<8x32xf32>
    %c0_29 = arith.constant 0 : index
    %c0_30 = arith.constant 0 : index
    %39 = vector.load %arg11[%c0_29, %c0_30] : memref<1x32xf32, #tpu.memory_space<vmem>>, vector<1x32xf32>
    %40 = vector.broadcast %39 : vector<1x32xf32> to vector<8x32xf32>
    %41 = arith.addf %38, %40 : vector<8x32xf32>
    %cst_31 = arith.constant 0.000000e+00 : f32
    %42 = vector.broadcast %cst_31 : f32 to vector<8x32xf32>
    %43 = arith.cmpf ogt, %41, %42 : vector<8x32xf32>
    %cst_32 = arith.constant 0.00999999977 : f32
    %44 = vector.broadcast %cst_32 : f32 to vector<8x32xf32>
    %45 = arith.mulf %44, %41 : vector<8x32xf32>
    %46 = arith.select %43, %41, %45 : vector<8x32xi1>, vector<8x32xf32>
    %47 = vector.extract_strided_slice %26 {offsets = [0, 0], sizes = [8, 32], strides = [1, 1]} : vector<8x64xf32> to vector<8x32xf32>
    %48 = vector.extract_strided_slice %26 {offsets = [0, 32], sizes = [8, 32], strides = [1, 1]} : vector<8x64xf32> to vector<8x32xf32>
    %49 = arith.mulf %47, %48 : vector<8x32xf32>
    %c0_33 = arith.constant 0 : index
    %c0_34 = arith.constant 0 : index
    %50 = vector.load %arg12[%c0_33, %c0_34] : memref<32x16xf32, #tpu.memory_space<vmem>>, vector<32x16xf32>
    %cst_35 = arith.constant dense<0.000000e+00> : vector<8x16xf32>
    %51 = tpu.matmul %46, %50, %cst_35 {dimension_numbers = #tpu.dot_dimension_numbers<[1], [0], [0], [1], [0, 0, 1, 1], [], []>} : vector<8x32xf32>, vector<32x16xf32>, vector<8x16xf32> -> vector<8x16xf32>
    %c0_36 = arith.constant 0 : index
    %c0_37 = arith.constant 0 : index
    %52 = vector.load %arg13[%c0_36, %c0_37] : memref<32x16xf32, #tpu.memory_space<vmem>>, vector<32x16xf32>
    %cst_38 = arith.constant dense<0.000000e+00> : vector<8x16xf32>
    %53 = tpu.matmul %49, %52, %cst_38 {dimension_numbers = #tpu.dot_dimension_numbers<[1], [0], [0], [1], [0, 0, 1, 1], [], []>} : vector<8x32xf32>, vector<32x16xf32>, vector<8x16xf32> -> vector<8x16xf32>
    %54 = arith.addf %51, %53 : vector<8x16xf32>
    %c0_39 = arith.constant 0 : index
    %c0_40 = arith.constant 0 : index
    %55 = vector.load %arg14[%c0_39, %c0_40] : memref<1x16xf32, #tpu.memory_space<vmem>>, vector<1x16xf32>
    %56 = vector.broadcast %55 : vector<1x16xf32> to vector<8x16xf32>
    %57 = arith.addf %54, %56 : vector<8x16xf32>
    %cst_41 = arith.constant 0.000000e+00 : f32
    %58 = vector.broadcast %cst_41 : f32 to vector<8x16xf32>
    %59 = arith.cmpf ogt, %57, %58 : vector<8x16xf32>
    %cst_42 = arith.constant 0.00999999977 : f32
    %60 = vector.broadcast %cst_42 : f32 to vector<8x16xf32>
    %61 = arith.mulf %60, %57 : vector<8x16xf32>
    %62 = arith.select %59, %57, %61 : vector<8x16xi1>, vector<8x16xf32>
    %c0_43 = arith.constant 0 : index
    %c0_44 = arith.constant 0 : index
    %63 = vector.load %arg15[%c0_43, %c0_44] : memref<1x16xf32, #tpu.memory_space<vmem>>, vector<1x16xf32>
    %cst_45 = arith.constant dense<0.000000e+00> : vector<1x8xf32>
    %64 = tpu.matmul %63, %62, %cst_45 {dimension_numbers = #tpu.dot_dimension_numbers<[1], [1], [0], [0], [0, 0, 1, 0], [], []>} : vector<1x16xf32>, vector<8x16xf32>, vector<1x8xf32> -> vector<1x8xf32>
    %c0_46 = arith.constant 0 : index
    %c0_47 = arith.constant 0 : index
    %65 = vector.load %arg16[%c0_46, %c0_47] : memref<1x1xf32, #tpu.memory_space<vmem>>, vector<1x1xf32>
    %66 = vector.broadcast %65 : vector<1x1xf32> to vector<1x8xf32>
    %67 = arith.addf %64, %66 : vector<1x8xf32>
    %68 = vector.shape_cast %67 : vector<1x8xf32> to vector<1x1x8xf32>
    %c0_48 = arith.constant 0 : index
    %c0_49 = arith.constant 0 : index
    %c0_50 = arith.constant 0 : index
    %69 = vector.load %arg17[%c0_48, %c0_49, %c0_50] : memref<1x1x8xf32, #tpu.memory_space<vmem>>, vector<1x1x8xf32>
    tpu.vector_store %arg17[%c0_48, %c0_49, %c0_50], %68 {strides = array<i32>} : memref<1x1x8xf32, #tpu.memory_space<vmem>>, vector<1x1x8xf32>,
    return
  }
  func.func @transform_0(%arg0: i32) -> (i32, i32) {
    %c0_i32 = arith.constant 0 : i32
    %c0_i32_0 = arith.constant 0 : i32
    return %arg0, %c0_i32 : i32, i32
  }
  func.func @transform_1(%arg0: i32) -> (i32, i32) {
    %c0_i32 = arith.constant 0 : i32
    %c0_i32_0 = arith.constant 0 : i32
    return %arg0, %c0_i32 : i32, i32
  }
  func.func @transform_2(%arg0: i32) -> (i32, i32) {
    %c0_i32 = arith.constant 0 : i32
    %c0_i32_0 = arith.constant 0 : i32
    %c0_i32_1 = arith.constant 0 : i32
    return %c0_i32, %c0_i32_0 : i32, i32
  }
  func.func @transform_3(%arg0: i32) -> (i32, i32) {
    %c0_i32 = arith.constant 0 : i32
    %c0_i32_0 = arith.constant 0 : i32
    %c0_i32_1 = arith.constant 0 : i32
    return %c0_i32, %c0_i32_0 : i32, i32
  }
  func.func @transform_4(%arg0: i32) -> (i32, i32) {
    %c0_i32 = arith.constant 0 : i32
    %c0_i32_0 = arith.constant 0 : i32
    %c0_i32_1 = arith.constant 0 : i32
    return %c0_i32, %c0_i32_0 : i32, i32
  }
  func.func @transform_5(%arg0: i32) -> (i32, i32) {
    %c0_i32 = arith.constant 0 : i32
    %c0_i32_0 = arith.constant 0 : i32
    %c0_i32_1 = arith.constant 0 : i32
    return %c0_i32, %c0_i32_0 : i32, i32
  }
  func.func @transform_6(%arg0: i32) -> (i32, i32) {
    %c0_i32 = arith.constant 0 : i32
    %c0_i32_0 = arith.constant 0 : i32
    %c0_i32_1 = arith.constant 0 : i32
    return %c0_i32, %c0_i32_0 : i32, i32
  }
  func.func @transform_7(%arg0: i32) -> (i32, i32) {
    %c0_i32 = arith.constant 0 : i32
    %c0_i32_0 = arith.constant 0 : i32
    %c0_i32_1 = arith.constant 0 : i32
    return %c0_i32, %c0_i32_0 : i32, i32
  }
  func.func @transform_8(%arg0: i32) -> (i32, i32) {
    %c0_i32 = arith.constant 0 : i32
    %c0_i32_0 = arith.constant 0 : i32
    %c0_i32_1 = arith.constant 0 : i32
    return %c0_i32, %c0_i32_0 : i32, i32
  }
  func.func @transform_9(%arg0: i32) -> (i32, i32) {
    %c0_i32 = arith.constant 0 : i32
    %c0_i32_0 = arith.constant 0 : i32
    %c0_i32_1 = arith.constant 0 : i32
    return %c0_i32, %c0_i32_0 : i32, i32
  }
  func.func @transform_10(%arg0: i32) -> (i32, i32) {
    %c0_i32 = arith.constant 0 : i32
    %c0_i32_0 = arith.constant 0 : i32
    %c0_i32_1 = arith.constant 0 : i32
    return %c0_i32, %c0_i32_0 : i32, i32
  }
  func.func @transform_11(%arg0: i32) -> (i32, i32) {
    %c0_i32 = arith.constant 0 : i32
    %c0_i32_0 = arith.constant 0 : i32
    %c0_i32_1 = arith.constant 0 : i32
    return %c0_i32, %c0_i32_0 : i32, i32
  }
  func.func @transform_12(%arg0: i32) -> (i32, i32) {
    %c0_i32 = arith.constant 0 : i32
    %c0_i32_0 = arith.constant 0 : i32
    %c0_i32_1 = arith.constant 0 : i32
    return %c0_i32, %c0_i32_0 : i32, i32
  }
  func.func @transform_13(%arg0: i32) -> (i32, i32) {
    %c0_i32 = arith.constant 0 : i32
    %c0_i32_0 = arith.constant 0 : i32
    %c0_i32_1 = arith.constant 0 : i32
    return %c0_i32, %c0_i32_0 : i32, i32
  }
  func.func @transform_14(%arg0: i32) -> (i32, i32) {
    %c0_i32 = arith.constant 0 : i32
    %c0_i32_0 = arith.constant 0 : i32
    %c0_i32_1 = arith.constant 0 : i32
    return %c0_i32, %c0_i32_0 : i32, i32
  }
  func.func @transform_15(%arg0: i32) -> (i32, i32) {
    %c0_i32 = arith.constant 0 : i32
    %c0_i32_0 = arith.constant 0 : i32
    %c0_i32_1 = arith.constant 0 : i32
    return %c0_i32, %c0_i32_0 : i32, i32
  }
  func.func @transform_16(%arg0: i32) -> (i32, i32, i32) {
    %c0_i32 = arith.constant 0 : i32
    %c0_i32_0 = arith.constant 0 : i32
    %c0_i32_1 = arith.constant 0 : i32
    return %arg0, %c0_i32, %c0_i32_0 : i32, i32, i32
  }
}

</mosaic_0001>

<llo_original>
// kernel: tpu_custom_call.1
$region0: #{tpu_custom_call.1}
  #allocation0 [shape = 'u32[]', space=smem, size = 0x4, offset = 0x4, fixed_abs, tag = 'smem constant byte address 0x4 - core index']
  #allocation1 [shape = 'u32[144,128]{1,0:T(1,128)}', space=vmem, size = 0x12000, scoped, tag = 'internal scratch']
  #allocation2 [shape = 'f32[1,1]{1,0:T(1,128)S(1)}', space=vmem, size = 0x200, scoped, tag = 'scoped memory for tpu_custom_call.1']
  %s0 = inlined_call_operand.vmem [shape: bf16[8,16], index: 0, kind: input, shape index: {}]
  %s1 = inlined_call_operand.vmem [shape: bf16[8,24], index: 1, kind: input, shape index: {}]
  %s2 = inlined_call_operand.hbm [shape: f32[16,64], index: 2, kind: input, shape index: {}]
  %s3 = inlined_call_operand.vmem [shape: f32[24,64], index: 3, kind: input, shape index: {}]
  %s4 = inlined_call_operand.vmem [shape: f32[1,64], index: 4, kind: input, shape index: {}]
  %s5 = inlined_call_operand.vmem [shape: f32[64,64], index: 5, kind: input, shape index: {}]
  %s6 = inlined_call_operand.vmem [shape: f32[1,64], index: 6, kind: input, shape index: {}]
  %s7 = inlined_call_operand.vmem [shape: f32[64,64], index: 7, kind: input, shape index: {}]
  %s8 = inlined_call_operand.vmem [shape: f32[1,64], index: 8, kind: input, shape index: {}]
  %s9 = inlined_call_operand.vmem [shape: f32[64,32], index: 9, kind: input, shape index: {}]
  %s10 = inlined_call_operand.vmem [shape: f32[1,32], index: 10, kind: input, shape index: {}]
  %s11 = inlined_call_operand.vmem [shape: f32[32,16], index: 11, kind: input, shape index: {}]
  %s12 = inlined_call_operand.vmem [shape: f32[32,16], index: 12, kind: input, shape index: {}]
  %s13 = inlined_call_operand.vmem [shape: f32[1,16], index: 13, kind: input, shape index: {}]
  %s14 = inlined_call_operand.vmem [shape: f32[1,16], index: 14, kind: input, shape index: {}]
  %s15 = inlined_call_operand.<no memory space> [shape: f32[1,1], index: 15, kind: input, shape index: {}]
  %s16 = inlined_call_operand.hbm [shape: f32[1,1,8], index: 16, kind: output, shape index: {}]
  %s17 = sld [smem:[#allocation0]]
  $region78: #{tpu_custom_call.1} parent=0
    _
  %s19 = ssub.s32 1, %s17
  %s20 = scalar_select 0, %s19, %s17
  %v21 = vstv %s15
  %22 = vst [vmem:[#allocation2] sm:$0x1] %v21
  $region1: #{tpu_custom_call.1} parent=0
    #allocation3 [shape = 'u8[8192]{0}', space=vmem, size = 0x2000, scoped, tag = 'input window, operand 2, single buffered']
    #allocation4 [shape = 's32[1]{0}', space=sflag, size = 0x4, scoped, tag = 'scoped memory for tpu_custom_call.1']
    #allocation5 [shape = 's32[1]{0}', space=sflag, size = 0x4, scoped, tag = 'scoped memory for tpu_custom_call.1']
    #allocation6 [shape = 'u8[512]{0}', space=vmem, size = 0x400, scoped, tag = 'output window, operand 0, single buffered']
    %23 = vsyncpa [#allocation4], 0
    %24 = vsyncpa [#allocation5], 0
    // Predicated region
    $region2: #{tpu_custom_call.1} parent=1 // pred_check
      _
    $region3: #{tpu_custom_call.1} parent=1 // pred_check_branch
      %26 = sbr.rel (0) target = $region5
    $region4: #{tpu_custom_call.1} parent=1 // pred_region
      _
    $region5: #{tpu_custom_call.1} parent=1 // pred_fallthru
      _
    // Predicated region
    $region6: #{tpu_custom_call.1} parent=1 // pred_check
      _
    $region7: #{tpu_custom_call.1} parent=1 // pred_check_branch
      %28 = sbr.rel (0) target = $region9
    $region8: #{tpu_custom_call.1} parent=1 // pred_region
      _
    $region9: #{tpu_custom_call.1} parent=1 // pred_fallthru
      _
    // Predicated region
    $region10: #{tpu_custom_call.1} parent=1 // pred_check
      _
    $region11: #{tpu_custom_call.1} parent=1 // pred_check_branch
      %30 = sbr.rel (0) target = $region13
    $region12: #{tpu_custom_call.1} parent=1 // pred_region
      %s32 = ssub.s32 256, 256
      %33 = vsyncadd [#allocation4], %s32
      %s34 = sshll.u32 [#allocation3], 4
      %s35 = int_to_ptr.vmem [resolvable:$true] %s34
      %40 = dma.hbm_to_vmem [thread:$0]  %s2, 256, %s35, [#allocation4], 128, 128, 8
    $region13: #{tpu_custom_call.1} parent=1 // pred_fallthru
      _
    // Predicated region
    $region14: #{tpu_custom_call.1} parent=1 // pred_check
      _
    $region15: #{tpu_custom_call.1} parent=1 // pred_check_branch
      %42 = sbr.rel (0) target = $region17
    $region16: #{tpu_custom_call.1} parent=1 // pred_region
      _
    $region17: #{tpu_custom_call.1} parent=1 // pred_fallthru
      _
    // Predicated region
    $region18: #{tpu_custom_call.1} parent=1 // pred_check
      _
    $region19: #{tpu_custom_call.1} parent=1 // pred_check_branch
      %44 = sbr.rel (0) target = $region21
    $region20: #{tpu_custom_call.1} parent=1 // pred_region
      _
    $region21: #{tpu_custom_call.1} parent=1 // pred_fallthru
      _
    // Predicated region
    $region22: #{tpu_custom_call.1} parent=1 // pred_check
      _
    $region23: #{tpu_custom_call.1} parent=1 // pred_check_branch
      %46 = sbr.rel (0) target = $region25
    $region24: #{tpu_custom_call.1} parent=1 // pred_region
      _
    $region25: #{tpu_custom_call.1} parent=1 // pred_fallthru
      _
    // Predicated region
    $region26: #{tpu_custom_call.1} parent=1 // pred_check
      _
    $region27: #{tpu_custom_call.1} parent=1 // pred_check_branch
      %48 = sbr.rel (0) target = $region29
    $region28: #{tpu_custom_call.1} parent=1 // pred_region
      _
    $region29: #{tpu_custom_call.1} parent=1 // pred_fallthru
      _
    // Predicated region
    $region30: #{tpu_custom_call.1} parent=1 // pred_check
      _
    $region31: #{tpu_custom_call.1} parent=1 // pred_check_branch
      %50 = sbr.rel (0) target = $region33
    $region32: #{tpu_custom_call.1} parent=1 // pred_region
      _
    $region33: #{tpu_custom_call.1} parent=1 // pred_fallthru
      _
    // Predicated region
    $region34: #{tpu_custom_call.1} parent=1 // pred_check
      _
    $region35: #{tpu_custom_call.1} parent=1 // pred_check_branch
      %52 = sbr.rel (0) target = $region37
    $region36: #{tpu_custom_call.1} parent=1 // pred_region
      _
    $region37: #{tpu_custom_call.1} parent=1 // pred_fallthru
      _
    // Predicated region
    $region38: #{tpu_custom_call.1} parent=1 // pred_check
      _
    $region39: #{tpu_custom_call.1} parent=1 // pred_check_branch
      %54 = sbr.rel (0) target = $region41
    $region40: #{tpu_custom_call.1} parent=1 // pred_region
      _
    $region41: #{tpu_custom_call.1} parent=1 // pred_fallthru
      _
    // Predicated region
    $region42: #{tpu_custom_call.1} parent=1 // pred_check
      _
    $region43: #{tpu_custom_call.1} parent=1 // pred_check_branch
      %56 = sbr.rel (0) target = $region45
    $region44: #{tpu_custom_call.1} parent=1 // pred_region
      _
    $region45: #{tpu_custom_call.1} parent=1 // pred_fallthru
      _
    // Predicated region
    $region46: #{tpu_custom_call.1} parent=1 // pred_check
      _
    $region47: #{tpu_custom_call.1} parent=1 // pred_check_branch
      %58 = sbr.rel (0) target = $region49
    $region48: #{tpu_custom_call.1} parent=1 // pred_region
      _
    $region49: #{tpu_custom_call.1} parent=1 // pred_fallthru
      _
    // Predicated region
    $region50: #{tpu_custom_call.1} parent=1 // pred_check
      _
    $region51: #{tpu_custom_call.1} parent=1 // pred_check_branch
      %60 = sbr.rel (0) target = $region53
    $region52: #{tpu_custom_call.1} parent=1 // pred_region
      _
    $region53: #{tpu_custom_call.1} parent=1 // pred_fallthru
      _
    // Predicated region
    $region54: #{tpu_custom_call.1} parent=1 // pred_check
      _
    $region55: #{tpu_custom_call.1} parent=1 // pred_check_branch
      %62 = sbr.rel (0) target = $region57
    $region56: #{tpu_custom_call.1} parent=1 // pred_region
      _
    $region57: #{tpu_custom_call.1} parent=1 // pred_fallthru
      _
    // Predicated region
    $region58: #{tpu_custom_call.1} parent=1 // pred_check
      _
    $region59: #{tpu_custom_call.1} parent=1 // pred_check_branch
      %64 = sbr.rel (0) target = $region61
    $region60: #{tpu_custom_call.1} parent=1 // pred_region
      _
    $region61: #{tpu_custom_call.1} parent=1 // pred_fallthru
      _
    // Predicated region
    $region62: #{tpu_custom_call.1} parent=1 // pred_check
      _
    $region63: #{tpu_custom_call.1} parent=1 // pred_check_branch
      %66 = sbr.rel (0) target = $region65
    $region64: #{tpu_custom_call.1} parent=1 // pred_region
      _
    $region65: #{tpu_custom_call.1} parent=1 // pred_fallthru
      _
    // Predicated region
    $region66: #{tpu_custom_call.1} parent=1 // pred_check
      _
    $region67: #{tpu_custom_call.1} parent=1 // pred_check_branch
      %68 = sbr.rel (0) target = $region69
    $region68: #{tpu_custom_call.1} parent=1 // pred_region
      %69 = dma.done [#allocation4], 256
    $region69: #{tpu_custom_call.1} parent=1 // pred_fallthru
      _
    %v70 = vld [vmem:[%s0] sm:$0xf]
    %v71 = vunpack.c.l.bf16 %v70
    %v72 = vld [vmem:[%s1] sm:$0xf]
    %v73 = vunpack.c.l.bf16 %v72
    %v74 = vld [vmem:[#allocation3] sm:$0xff]
    %v75 = vld [vmem:[#allocation3 + $0x8] sm:$0xff]
    %v76 = vld [vmem:[%s3] sm:$0xff]
    %v77 = vld [vmem:[%s3 + $0x8] sm:$0xff]
    %v78 = vld [vmem:[%s3 + $0x10] sm:$0xff]
    %vm79 = vcmask 195584
    %v81 = vsel %vm79, %v73, 0
    %83 = vmatprep.subr.mxu0 0.0
    %84 = vmatpush1.msra.mxu0 0.0
    %85 = vmatprep.subr.mxu0 0.0
    %86 = vmatpush1.msra.mxu0 0.0
    %87 = vmatprep.subr.mxu0 0.0
    %88 = vmatpush1.msra.mxu0 0.0
    %89 = vmatprep.subr.mxu0 0.0
    %90 = vmatpush1.msra.mxu0 0.0
    %91 = vmatprep.subr.mxu0 0.0
    %92 = vmatpush1.msra.mxu0 0.0
    %93 = vmatprep.subr.mxu0 0.0
    %94 = vmatpush1.msra.mxu0 0.0
    %95 = vmatprep.subr.mxu0 0.0
    %96 = vmatpush1.msra.mxu0 0.0
    %97 = vmatprep.subr.mxu0 0.0
    %98 = vmatpush1.msra.mxu0 0.0
    %99 = vmatprep.subr.mxu0 0.0
    %100 = vmatpush1.msra.mxu0 0.0
    %101 = vmatprep.subr.mxu0 0.0
    %102 = vmatpush1.msra.mxu0 0.0
    %103 = vmatprep.subr.mxu0 0.0
    %104 = vmatpush1.msra.mxu0 0.0
    %105 = vmatprep.subr.mxu0 0.0
    %106 = vmatpush1.msra.mxu0 0.0
    %107 = vmatprep.subr.mxu0 0.0
    %108 = vmatpush1.msra.mxu0 0.0
    %109 = vmatprep.subr.mxu0 0.0
    %110 = vmatpush1.msra.mxu0 %v78
    %111 = vmatprep.subr.mxu0 0.0
    %112 = vmatpush1.msra.mxu0 %v77
    %113 = vmatprep.subr.mxu0 0.0
    %114 = vmatpush1.msra.mxu0 %v76
    %115 = vmatprep.subr.mxu0 0.0
    %116 = vmatpush2.msra.mxu0 0.0
    %117 = vmatprep.subr.mxu0 0.0
    %118 = vmatpush2.msra.mxu0 0.0
    %119 = vmatprep.subr.mxu0 0.0
    %120 = vmatpush2.msra.mxu0 0.0
    %121 = vmatprep.subr.mxu0 0.0
    %122 = vmatpush2.msra.mxu0 0.0
    %123 = vmatprep.subr.mxu0 0.0
    %124 = vmatpush2.msra.mxu0 0.0
    %125 = vmatprep.subr.mxu0 0.0
    %126 = vmatpush2.msra.mxu0 0.0
    %127 = vmatprep.subr.mxu0 0.0
    %128 = vmatpush2.msra.mxu0 0.0
    %129 = vmatprep.subr.mxu0 0.0
    %130 = vmatpush2.msra.mxu0 0.0
    %131 = vmatprep.subr.mxu0 0.0
    %132 = vmatpush2.msra.mxu0 0.0
    %133 = vmatprep.subr.mxu0 0.0
    %134 = vmatpush2.msra.mxu0 0.0
    %135 = vmatprep.subr.mxu0 0.0
    %136 = vmatpush2.msra.mxu0 0.0
    %137 = vmatprep.subr.mxu0 0.0
    %138 = vmatpush2.msra.mxu0 0.0
    %139 = vmatprep.subr.mxu0 0.0
    %140 = vmatpush2.msra.mxu0 0.0
    %141 = vmatprep.subr.mxu0 0.0
    %142 = vmatpush2.msra.mxu0 0.0
    %143 = vmatprep.subr.mxu0 0.0
    %144 = vmatpush2.msra.mxu0 0.0
    %145 = vmatprep.subr.mxu0 0.0
    %146 = vmatpush2.msra.mxu0 0.0
    %147 = vmatprep.mubr.f32.mxu0 0.0
    %148 = vmatmul.mubr.f32.gmra.mxu0 %v81
    %v149 = vpop.f32.mrf.mxu0
    %v150 = vadd.f32 0.0, %v149
    %v151 = vpop.f32.mrf.mxu0
    %152 = vdwg.mxu0
    %vm153 = vcmask 130048
    %v155 = vsel %vm153, %v71, 0
    %157 = vmatprep.subr.mxu0 0.0
    %158 = vmatpush1.msra.mxu0 0.0
    %159 = vmatprep.subr.mxu0 0.0
    %160 = vmatpush1.msra.mxu0 0.0
    %161 = vmatprep.subr.mxu0 0.0
    %162 = vmatpush1.msra.mxu0 0.0
    %163 = vmatprep.subr.mxu0 0.0
    %164 = vmatpush1.msra.mxu0 0.0
    %165 = vmatprep.subr.mxu0 0.0
    %166 = vmatpush1.msra.mxu0 0.0
    %167 = vmatprep.subr.mxu0 0.0
    %168 = vmatpush1.msra.mxu0 0.0
    %169 = vmatprep.subr.mxu0 0.0
    %170 = vmatpush1.msra.mxu0 0.0
    %171 = vmatprep.subr.mxu0 0.0
    %172 = vmatpush1.msra.mxu0 0.0
    %173 = vmatprep.subr.mxu0 0.0
    %174 = vmatpush1.msra.mxu0 0.0
    %175 = vmatprep.subr.mxu0 0.0
    %176 = vmatpush1.msra.mxu0 0.0
    %177 = vmatprep.subr.mxu0 0.0
    %178 = vmatpush1.msra.mxu0 0.0
    %179 = vmatprep.subr.mxu0 0.0
    %180 = vmatpush1.msra.mxu0 0.0
    %181 = vmatprep.subr.mxu0 0.0
    %182 = vmatpush1.msra.mxu0 0.0
    %183 = vmatprep.subr.mxu0 0.0
    %184 = vmatpush1.msra.mxu0 0.0
    %185 = vmatprep.subr.mxu0 0.0
    %186 = vmatpush1.msra.mxu0 %v75
    %187 = vmatprep.subr.mxu0 0.0
    %188 = vmatpush1.msra.mxu0 %v74
    %189 = vmatprep.subr.mxu0 0.0
    %190 = vmatpush2.msra.mxu0 0.0
    %191 = vmatprep.subr.mxu0 0.0
    %192 = vmatpush2.msra.mxu0 0.0
    %193 = vmatprep.subr.mxu0 0.0
    %194 = vmatpush2.msra.mxu0 0.0
    %195 = vmatprep.subr.mxu0 0.0
    %196 = vmatpush2.msra.mxu0 0.0
    %197 = vmatprep.subr.mxu0 0.0
    %198 = vmatpush2.msra.mxu0 0.0
    %199 = vmatprep.subr.mxu0 0.0
    %200 = vmatpush2.msra.mxu0 0.0
    %201 = vmatprep.subr.mxu0 0.0
    %202 = vmatpush2.msra.mxu0 0.0
    %203 = vmatprep.subr.mxu0 0.0
    %204 = vmatpush2.msra.mxu0 0.0
    %205 = vmatprep.subr.mxu0 0.0
    %206 = vmatpush2.msra.mxu0 0.0
    %207 = vmatprep.subr.mxu0 0.0
    %208 = vmatpush2.msra.mxu0 0.0
    %209 = vmatprep.subr.mxu0 0.0
    %210 = vmatpush2.msra.mxu0 0.0
    %211 = vmatprep.subr.mxu0 0.0
    %212 = vmatpush2.msra.mxu0 0.0
    %213 = vmatprep.subr.mxu0 0.0
    %214 = vmatpush2.msra.mxu0 0.0
    %215 = vmatprep.subr.mxu0 0.0
    %216 = vmatpush2.msra.mxu0 0.0
    %217 = vmatprep.subr.mxu0 0.0
    %218 = vmatpush2.msra.mxu0 0.0
    %219 = vmatprep.subr.mxu0 0.0
    %220 = vmatpush2.msra.mxu0 0.0
    %221 = vmatprep.mubr.f32.mxu0 0.0
    %222 = vmatmul.mubr.f32.gmra.mxu0 %v155
    %v223 = vpop.f32.mrf.mxu0
    %v224 = vadd.f32 %v150, %v223
    %v225 = vpop.f32.mrf.mxu0
    %226 = vdwg.mxu0
    %v227 = vld [vmem:[%s4] sm:$0x1]
    %v229 = vlaneseq
    %v230 = vshrl.u32 %v229, 7
    %v231 = vsub.s32 0, %v230
    %v232 = vrot.slane %v227, %v231
    %v234 = vadd.f32 %v224, %v232
    %vm235 = vcmp.gt.f32.partialorder %v234, 0.0
    %v236 = vmul.f32 %v234, 0.01
    %v237 = vsel %vm235, %v234, %v236
    %v238 = vld [vmem:[%s5] sm:$0xff]
    %v239 = vld [vmem:[%s5 + $0x8] sm:$0xff]
    %v240 = vld [vmem:[%s5 + $0x10] sm:$0xff]
    %v241 = vld [vmem:[%s5 + $0x18] sm:$0xff]
    %v242 = vld [vmem:[%s5 + $0x20] sm:$0xff]
    %v243 = vld [vmem:[%s5 + $0x28] sm:$0xff]
    %v244 = vld [vmem:[%s5 + $0x30] sm:$0xff]
    %v245 = vld [vmem:[%s5 + $0x38] sm:$0xff]
    %v246 = vld [vmem:[%s6] sm:$0x1]
    %v248 = vlaneseq
    %v249 = vshrl.u32 %v248, 7
    %v250 = vsub.s32 0, %v249
    %v251 = vrot.slane %v246, %v250
    %vm253 = vcmask 523264
    %v255 = vsel %vm253, %v237, 0
    %257 = vmatprep.subr.mxu0 0.0
    %258 = vmatpush1.msra.mxu0 0.0
    %259 = vmatprep.subr.mxu0 0.0
    %260 = vmatpush1.msra.mxu0 0.0
    %261 = vmatprep.subr.mxu0 0.0
    %262 = vmatpush1.msra.mxu0 0.0
    %263 = vmatprep.subr.mxu0 0.0
    %264 = vmatpush1.msra.mxu0 0.0
    %265 = vmatprep.subr.mxu0 0.0
    %266 = vmatpush1.msra.mxu0 0.0
    %267 = vmatprep.subr.mxu0 0.0
    %268 = vmatpush1.msra.mxu0 0.0
    %269 = vmatprep.subr.mxu0 0.0
    %270 = vmatpush1.msra.mxu0 0.0
    %271 = vmatprep.subr.mxu0 0.0
    %272 = vmatpush1.msra.mxu0 0.0
    %273 = vmatprep.subr.mxu0 0.0
    %274 = vmatpush1.msra.mxu0 %v245
    %275 = vmatprep.subr.mxu0 0.0
    %276 = vmatpush1.msra.mxu0 %v244
    %277 = vmatprep.subr.mxu0 0.0
    %278 = vmatpush1.msra.mxu0 %v243
    %279 = vmatprep.subr.mxu0 0.0
    %280 = vmatpush1.msra.mxu0 %v242
    %281 = vmatprep.subr.mxu0 0.0
    %282 = vmatpush1.msra.mxu0 %v241
    %283 = vmatprep.subr.mxu0 0.0
    %284 = vmatpush1.msra.mxu0 %v240
    %285 = vmatprep.subr.mxu0 0.0
    %286 = vmatpush1.msra.mxu0 %v239
    %287 = vmatprep.subr.mxu0 0.0
    %288 = vmatpush1.msra.mxu0 %v238
    %289 = vmatprep.subr.mxu0 0.0
    %290 = vmatpush2.msra.mxu0 0.0
    %291 = vmatprep.subr.mxu0 0.0
    %292 = vmatpush2.msra.mxu0 0.0
    %293 = vmatprep.subr.mxu0 0.0
    %294 = vmatpush2.msra.mxu0 0.0
    %295 = vmatprep.subr.mxu0 0.0
    %296 = vmatpush2.msra.mxu0 0.0
    %297 = vmatprep.subr.mxu0 0.0
    %298 = vmatpush2.msra.mxu0 0.0
    %299 = vmatprep.subr.mxu0 0.0
    %300 = vmatpush2.msra.mxu0 0.0
    %301 = vmatprep.subr.mxu0 0.0
    %302 = vmatpush2.msra.mxu0 0.0
    %303 = vmatprep.subr.mxu0 0.0
    %304 = vmatpush2.msra.mxu0 0.0
    %305 = vmatprep.subr.mxu0 0.0
    %306 = vmatpush2.msra.mxu0 0.0
    %307 = vmatprep.subr.mxu0 0.0
    %308 = vmatpush2.msra.mxu0 0.0
    %309 = vmatprep.subr.mxu0 0.0
    %310 = vmatpush2.msra.mxu0 0.0
    %311 = vmatprep.subr.mxu0 0.0
    %312 = vmatpush2.msra.mxu0 0.0
    %313 = vmatprep.subr.mxu0 0.0
    %314 = vmatpush2.msra.mxu0 0.0
    %315 = vmatprep.subr.mxu0 0.0
    %316 = vmatpush2.msra.mxu0 0.0
    %317 = vmatprep.subr.mxu0 0.0
    %318 = vmatpush2.msra.mxu0 0.0
    %319 = vmatprep.subr.mxu0 0.0
    %320 = vmatpush2.msra.mxu0 0.0
    %321 = vmatprep.mubr.f32.mxu0 0.0
    %322 = vmatmul.mubr.f32.gmra.mxu0 %v255
    %v323 = vpop.f32.mrf.mxu0
    %v324 = vadd.f32 %v251, %v323
    %v325 = vpop.f32.mrf.mxu0
    %326 = vdwg.mxu0
    %vm327 = vcmp.gt.f32.partialorder %v324, 0.0
    %v328 = vmul.f32 %v324, 0.01
    %v329 = vsel %vm327, %v324, %v328
    %v330 = vld [vmem:[%s7] sm:$0xff]
    %v331 = vld [vmem:[%s7 + $0x8] sm:$0xff]
    %v332 = vld [vmem:[%s7 + $0x10] sm:$0xff]
    %v333 = vld [vmem:[%s7 + $0x18] sm:$0xff]
    %v334 = vld [vmem:[%s7 + $0x20] sm:$0xff]
    %v335 = vld [vmem:[%s7 + $0x28] sm:$0xff]
    %v336 = vld [vmem:[%s7 + $0x30] sm:$0xff]
    %v337 = vld [vmem:[%s7 + $0x38] sm:$0xff]
    %v338 = vld [vmem:[%s8] sm:$0x1]
    %v340 = vlaneseq
    %v341 = vshrl.u32 %v340, 7
    %v342 = vsub.s32 0, %v341
    %v343 = vrot.slane %v338, %v342
    %v346 = vsel %vm253, %v329, 0
    %348 = vmatprep.subr.mxu0 0.0
    %349 = vmatpush1.msra.mxu0 0.0
    %350 = vmatprep.subr.mxu0 0.0
    %351 = vmatpush1.msra.mxu0 0.0
    %352 = vmatprep.subr.mxu0 0.0
    %353 = vmatpush1.msra.mxu0 0.0
    %354 = vmatprep.subr.mxu0 0.0
    %355 = vmatpush1.msra.mxu0 0.0
    %356 = vmatprep.subr.mxu0 0.0
    %357 = vmatpush1.msra.mxu0 0.0
    %358 = vmatprep.subr.mxu0 0.0
    %359 = vmatpush1.msra.mxu0 0.0
    %360 = vmatprep.subr.mxu0 0.0
    %361 = vmatpush1.msra.mxu0 0.0
    %362 = vmatprep.subr.mxu0 0.0
    %363 = vmatpush1.msra.mxu0 0.0
    %364 = vmatprep.subr.mxu0 0.0
    %365 = vmatpush1.msra.mxu0 %v337
    %366 = vmatprep.subr.mxu0 0.0
    %367 = vmatpush1.msra.mxu0 %v336
    %368 = vmatprep.subr.mxu0 0.0
    %369 = vmatpush1.msra.mxu0 %v335
    %370 = vmatprep.subr.mxu0 0.0
    %371 = vmatpush1.msra.mxu0 %v334
    %372 = vmatprep.subr.mxu0 0.0
    %373 = vmatpush1.msra.mxu0 %v333
    %374 = vmatprep.subr.mxu0 0.0
    %375 = vmatpush1.msra.mxu0 %v332
    %376 = vmatprep.subr.mxu0 0.0
    %377 = vmatpush1.msra.mxu0 %v331
    %378 = vmatprep.subr.mxu0 0.0
    %379 = vmatpush1.msra.mxu0 %v330
    %380 = vmatprep.subr.mxu0 0.0
    %381 = vmatpush2.msra.mxu0 0.0
    %382 = vmatprep.subr.mxu0 0.0
    %383 = vmatpush2.msra.mxu0 0.0
    %384 = vmatprep.subr.mxu0 0.0
    %385 = vmatpush2.msra.mxu0 0.0
    %386 = vmatprep.subr.mxu0 0.0
    %387 = vmatpush2.msra.mxu0 0.0
    %388 = vmatprep.subr.mxu0 0.0
    %389 = vmatpush2.msra.mxu0 0.0
    %390 = vmatprep.subr.mxu0 0.0
    %391 = vmatpush2.msra.mxu0 0.0
    %392 = vmatprep.subr.mxu0 0.0
    %393 = vmatpush2.msra.mxu0 0.0
    %394 = vmatprep.subr.mxu0 0.0
    %395 = vmatpush2.msra.mxu0 0.0
    %396 = vmatprep.subr.mxu0 0.0
    %397 = vmatpush2.msra.mxu0 0.0
    %398 = vmatprep.subr.mxu0 0.0
    %399 = vmatpush2.msra.mxu0 0.0
    %400 = vmatprep.subr.mxu0 0.0
    %401 = vmatpush2.msra.mxu0 0.0
    %402 = vmatprep.subr.mxu0 0.0
    %403 = vmatpush2.msra.mxu0 0.0
    %404 = vmatprep.subr.mxu0 0.0
    %405 = vmatpush2.msra.mxu0 0.0
    %406 = vmatprep.subr.mxu0 0.0
    %407 = vmatpush2.msra.mxu0 0.0
    %408 = vmatprep.subr.mxu0 0.0
    %409 = vmatpush2.msra.mxu0 0.0
    %410 = vmatprep.subr.mxu0 0.0
    %411 = vmatpush2.msra.mxu0 0.0
    %412 = vmatprep.mubr.f32.mxu0 0.0
    %413 = vmatmul.mubr.f32.gmra.mxu0 %v346
    %v414 = vpop.f32.mrf.mxu0
    %v415 = vadd.f32 %v343, %v414
    %v416 = vpop.f32.mrf.mxu0
    %417 = vdwg.mxu0
    %vm418 = vcmp.gt.f32.partialorder %v415, 0.0
    %v419 = vmul.f32 %v415, 0.01
    %v420 = vsel %vm418, %v415, %v419
    %v421 = vld [vmem:[%s9] sm:$0xff]
    %v422 = vld [vmem:[%s9 + $0x8] sm:$0xff]
    %v423 = vld [vmem:[%s9 + $0x10] sm:$0xff]
    %v424 = vld [vmem:[%s9 + $0x18] sm:$0xff]
    %v425 = vld [vmem:[%s9 + $0x20] sm:$0xff]
    %v426 = vld [vmem:[%s9 + $0x28] sm:$0xff]
    %v427 = vld [vmem:[%s9 + $0x30] sm:$0xff]
    %v428 = vld [vmem:[%s9 + $0x38] sm:$0xff]
    %v429 = vld [vmem:[%s10] sm:$0x1]
    %v431 = vlaneseq
    %v432 = vshrl.u32 %v431, 7
    %v433 = vsub.s32 0, %v432
    %v434 = vrot.slane %v429, %v433
    %v437 = vsel %vm253, %v420, 0
    %439 = vmatprep.subr.mxu0 0.0
    %440 = vmatpush1.msra.mxu0 0.0
    %441 = vmatprep.subr.mxu0 0.0
    %442 = vmatpush1.msra.mxu0 0.0
    %443 = vmatprep.subr.mxu0 0.0
    %444 = vmatpush1.msra.mxu0 0.0
    %445 = vmatprep.subr.mxu0 0.0
    %446 = vmatpush1.msra.mxu0 0.0
    %447 = vmatprep.subr.mxu0 0.0
    %448 = vmatpush1.msra.mxu0 0.0
    %449 = vmatprep.subr.mxu0 0.0
    %450 = vmatpush1.msra.mxu0 0.0
    %451 = vmatprep.subr.mxu0 0.0
    %452 = vmatpush1.msra.mxu0 0.0
    %453 = vmatprep.subr.mxu0 0.0
    %454 = vmatpush1.msra.mxu0 0.0
    %455 = vmatprep.subr.mxu0 0.0
    %456 = vmatpush1.msra.mxu0 %v428
    %457 = vmatprep.subr.mxu0 0.0
    %458 = vmatpush1.msra.mxu0 %v427
    %459 = vmatprep.subr.mxu0 0.0
    %460 = vmatpush1.msra.mxu0 %v426
    %461 = vmatprep.subr.mxu0 0.0
    %462 = vmatpush1.msra.mxu0 %v425
    %463 = vmatprep.subr.mxu0 0.0
    %464 = vmatpush1.msra.mxu0 %v424
    %465 = vmatprep.subr.mxu0 0.0
    %466 = vmatpush1.msra.mxu0 %v423
    %467 = vmatprep.subr.mxu0 0.0
    %468 = vmatpush1.msra.mxu0 %v422
    %469 = vmatprep.subr.mxu0 0.0
    %470 = vmatpush1.msra.mxu0 %v421
    %471 = vmatprep.subr.mxu0 0.0
    %472 = vmatpush2.msra.mxu0 0.0
    %473 = vmatprep.subr.mxu0 0.0
    %474 = vmatpush2.msra.mxu0 0.0
    %475 = vmatprep.subr.mxu0 0.0
    %476 = vmatpush2.msra.mxu0 0.0
    %477 = vmatprep.subr.mxu0 0.0
    %478 = vmatpush2.msra.mxu0 0.0
    %479 = vmatprep.subr.mxu0 0.0
    %480 = vmatpush2.msra.mxu0 0.0
    %481 = vmatprep.subr.mxu0 0.0
    %482 = vmatpush2.msra.mxu0 0.0
    %483 = vmatprep.subr.mxu0 0.0
    %484 = vmatpush2.msra.mxu0 0.0
    %485 = vmatprep.subr.mxu0 0.0
    %486 = vmatpush2.msra.mxu0 0.0
    %487 = vmatprep.subr.mxu0 0.0
    %488 = vmatpush2.msra.mxu0 0.0
    %489 = vmatprep.subr.mxu0 0.0
    %490 = vmatpush2.msra.mxu0 0.0
    %491 = vmatprep.subr.mxu0 0.0
    %492 = vmatpush2.msra.mxu0 0.0
    %493 = vmatprep.subr.mxu0 0.0
    %494 = vmatpush2.msra.mxu0 0.0
    %495 = vmatprep.subr.mxu0 0.0
    %496 = vmatpush2.msra.mxu0 0.0
    %497 = vmatprep.subr.mxu0 0.0
    %498 = vmatpush2.msra.mxu0 0.0
    %499 = vmatprep.subr.mxu0 0.0
    %500 = vmatpush2.msra.mxu0 0.0
    %501 = vmatprep.subr.mxu0 0.0
    %502 = vmatpush2.msra.mxu0 0.0
    %503 = vmatprep.mubr.f32.mxu0 0.0
    %504 = vmatmul.mubr.f32.gmra.mxu0 %v437
    %v505 = vpop.f32.mrf.mxu0
    %v506 = vadd.f32 %v434, %v505
    %v507 = vpop.f32.mrf.mxu0
    %508 = vdwg.mxu0
    %vm509 = vcmp.gt.f32.partialorder %v506, 0.0
    %v510 = vmul.f32 %v506, 0.01
    %v511 = vsel %vm509, %v506, %v510
    %512 = vrot.lane.b32.xlu0 %v329, 96
    %v513 = vpop.permute.xlu0 %512
    %v515 = vmul.f32 %v329, %v513
    %v516 = vld [vmem:[%s11] sm:$0xff]
    %v517 = vld [vmem:[%s11 + $0x8] sm:$0xff]
    %v518 = vld [vmem:[%s11 + $0x10] sm:$0xff]
    %v519 = vld [vmem:[%s11 + $0x18] sm:$0xff]
    %v520 = vld [vmem:[%s12] sm:$0xff]
    %v521 = vld [vmem:[%s12 + $0x8] sm:$0xff]
    %v522 = vld [vmem:[%s12 + $0x10] sm:$0xff]
    %v523 = vld [vmem:[%s12 + $0x18] sm:$0xff]
    %vm524 = vcmask 261120
    %v526 = vsel %vm524, %v515, 0
    %528 = vmatprep.subr.mxu0 0.0
    %529 = vmatpush1.msra.mxu0 0.0
    %530 = vmatprep.subr.mxu0 0.0
    %531 = vmatpush1.msra.mxu0 0.0
    %532 = vmatprep.subr.mxu0 0.0
    %533 = vmatpush1.msra.mxu0 0.0
    %534 = vmatprep.subr.mxu0 0.0
    %535 = vmatpush1.msra.mxu0 0.0
    %536 = vmatprep.subr.mxu0 0.0
    %537 = vmatpush1.msra.mxu0 0.0
    %538 = vmatprep.subr.mxu0 0.0
    %539 = vmatpush1.msra.mxu0 0.0
    %540 = vmatprep.subr.mxu0 0.0
    %541 = vmatpush1.msra.mxu0 0.0
    %542 = vmatprep.subr.mxu0 0.0
    %543 = vmatpush1.msra.mxu0 0.0
    %544 = vmatprep.subr.mxu0 0.0
    %545 = vmatpush1.msra.mxu0 0.0
    %546 = vmatprep.subr.mxu0 0.0
    %547 = vmatpush1.msra.mxu0 0.0
    %548 = vmatprep.subr.mxu0 0.0
    %549 = vmatpush1.msra.mxu0 0.0
    %550 = vmatprep.subr.mxu0 0.0
    %551 = vmatpush1.msra.mxu0 0.0
    %552 = vmatprep.subr.mxu0 0.0
    %553 = vmatpush1.msra.mxu0 %v523
    %554 = vmatprep.subr.mxu0 0.0
    %555 = vmatpush1.msra.mxu0 %v522
    %556 = vmatprep.subr.mxu0 0.0
    %557 = vmatpush1.msra.mxu0 %v521
    %558 = vmatprep.subr.mxu0 0.0
    %559 = vmatpush1.msra.mxu0 %v520
    %560 = vmatprep.subr.mxu0 0.0
    %561 = vmatpush2.msra.mxu0 0.0
    %562 = vmatprep.subr.mxu0 0.0
    %563 = vmatpush2.msra.mxu0 0.0
    %564 = vmatprep.subr.mxu0 0.0
    %565 = vmatpush2.msra.mxu0 0.0
    %566 = vmatprep.subr.mxu0 0.0
    %567 = vmatpush2.msra.mxu0 0.0
    %568 = vmatprep.subr.mxu0 0.0
    %569 = vmatpush2.msra.mxu0 0.0
    %570 = vmatprep.subr.mxu0 0.0
    %571 = vmatpush2.msra.mxu0 0.0
    %572 = vmatprep.subr.mxu0 0.0
    %573 = vmatpush2.msra.mxu0 0.0
    %574 = vmatprep.subr.mxu0 0.0
    %575 = vmatpush2.msra.mxu0 0.0
    %576 = vmatprep.subr.mxu0 0.0
    %577 = vmatpush2.msra.mxu0 0.0
    %578 = vmatprep.subr.mxu0 0.0
    %579 = vmatpush2.msra.mxu0 0.0
    %580 = vmatprep.subr.mxu0 0.0
    %581 = vmatpush2.msra.mxu0 0.0
    %582 = vmatprep.subr.mxu0 0.0
    %583 = vmatpush2.msra.mxu0 0.0
    %584 = vmatprep.subr.mxu0 0.0
    %585 = vmatpush2.msra.mxu0 0.0
    %586 = vmatprep.subr.mxu0 0.0
    %587 = vmatpush2.msra.mxu0 0.0
    %588 = vmatprep.subr.mxu0 0.0
    %589 = vmatpush2.msra.mxu0 0.0
    %590 = vmatprep.subr.mxu0 0.0
    %591 = vmatpush2.msra.mxu0 0.0
    %592 = vmatprep.mubr.f32.mxu0 0.0
    %593 = vmatmul.mubr.f32.gmra.mxu0 %v526
    %v594 = vpop.f32.mrf.mxu0
    %v595 = vadd.f32 0.0, %v594
    %v596 = vpop.f32.mrf.mxu0
    %597 = vdwg.mxu0
    %v599 = vsel %vm524, %v511, 0
    %601 = vmatprep.subr.mxu0 0.0
    %602 = vmatpush1.msra.mxu0 0.0
    %603 = vmatprep.subr.mxu0 0.0
    %604 = vmatpush1.msra.mxu0 0.0
    %605 = vmatprep.subr.mxu0 0.0
    %606 = vmatpush1.msra.mxu0 0.0
    %607 = vmatprep.subr.mxu0 0.0
    %608 = vmatpush1.msra.mxu0 0.0
    %609 = vmatprep.subr.mxu0 0.0
    %610 = vmatpush1.msra.mxu0 0.0
    %611 = vmatprep.subr.mxu0 0.0
    %612 = vmatpush1.msra.mxu0 0.0
    %613 = vmatprep.subr.mxu0 0.0
    %614 = vmatpush1.msra.mxu0 0.0
    %615 = vmatprep.subr.mxu0 0.0
    %616 = vmatpush1.msra.mxu0 0.0
    %617 = vmatprep.subr.mxu0 0.0
    %618 = vmatpush1.msra.mxu0 0.0
    %619 = vmatprep.subr.mxu0 0.0
    %620 = vmatpush1.msra.mxu0 0.0
    %621 = vmatprep.subr.mxu0 0.0
    %622 = vmatpush1.msra.mxu0 0.0
    %623 = vmatprep.subr.mxu0 0.0
    %624 = vmatpush1.msra.mxu0 0.0
    %625 = vmatprep.subr.mxu0 0.0
    %626 = vmatpush1.msra.mxu0 %v519
    %627 = vmatprep.subr.mxu0 0.0
    %628 = vmatpush1.msra.mxu0 %v518
    %629 = vmatprep.subr.mxu0 0.0
    %630 = vmatpush1.msra.mxu0 %v517
    %631 = vmatprep.subr.mxu0 0.0
    %632 = vmatpush1.msra.mxu0 %v516
    %633 = vmatprep.subr.mxu0 0.0
    %634 = vmatpush2.msra.mxu0 0.0
    %635 = vmatprep.subr.mxu0 0.0
    %636 = vmatpush2.msra.mxu0 0.0
    %637 = vmatprep.subr.mxu0 0.0
    %638 = vmatpush2.msra.mxu0 0.0
    %639 = vmatprep.subr.mxu0 0.0
    %640 = vmatpush2.msra.mxu0 0.0
    %641 = vmatprep.subr.mxu0 0.0
    %642 = vmatpush2.msra.mxu0 0.0
    %643 = vmatprep.subr.mxu0 0.0
    %644 = vmatpush2.msra.mxu0 0.0
    %645 = vmatprep.subr.mxu0 0.0
    %646 = vmatpush2.msra.mxu0 0.0
    %647 = vmatprep.subr.mxu0 0.0
    %648 = vmatpush2.msra.mxu0 0.0
    %649 = vmatprep.subr.mxu0 0.0
    %650 = vmatpush2.msra.mxu0 0.0
    %651 = vmatprep.subr.mxu0 0.0
    %652 = vmatpush2.msra.mxu0 0.0
    %653 = vmatprep.subr.mxu0 0.0
    %654 = vmatpush2.msra.mxu0 0.0
    %655 = vmatprep.subr.mxu0 0.0
    %656 = vmatpush2.msra.mxu0 0.0
    %657 = vmatprep.subr.mxu0 0.0
    %658 = vmatpush2.msra.mxu0 0.0
    %659 = vmatprep.subr.mxu0 0.0
    %660 = vmatpush2.msra.mxu0 0.0
    %661 = vmatprep.subr.mxu0 0.0
    %662 = vmatpush2.msra.mxu0 0.0
    %663 = vmatprep.subr.mxu0 0.0
    %664 = vmatpush2.msra.mxu0 0.0
    %665 = vmatprep.mubr.f32.mxu0 0.0
    %666 = vmatmul.mubr.f32.gmra.mxu0 %v599
    %v667 = vpop.f32.mrf.mxu0
    %v668 = vadd.f32 %v595, %v667
    %v669 = vpop.f32.mrf.mxu0
    %670 = vdwg.mxu0
    %v671 = vld [vmem:[%s13] sm:$0x1]
    %v673 = vlaneseq
    %v674 = vshrl.u32 %v673, 7
    %v675 = vsub.s32 0, %v674
    %v676 = vrot.slane %v671, %v675
    %v678 = vadd.f32 %v668, %v676
    %vm679 = vcmp.gt.f32.partialorder %v678, 0.0
    %v680 = vmul.f32 %v678, 0.01
    %v681 = vsel %vm679, %v678, %v680
    %v682 = vld [vmem:[%s14] sm:$0x1]
    %v683 = vld [vmem:[#allocation2] sm:$0x1]
    %685 = vset.pattern.permute.xlu0 0
    %686 = vperm.xlu0 %685, %v683
    %v687 = vpop.permute.xlu0 %686
    %v689 = vlaneseq
    %v690 = vshrl.u32 %v689, 7
    %v691 = vsub.s32 0, %v690
    %v692 = vrot.slane %v687, %v691
    %v694 = vsel %vm153, %v682, 0
    %v697 = vsel %vm153, %v681, 0
    %699 = vmatprep.subr.mxu0 0.0
    %700 = vmatpush1.xpose.msra.mxu0 0.0
    %701 = vmatprep.subr.mxu0 0.0
    %702 = vmatpush1.xpose.msra.mxu0 0.0
    %703 = vmatprep.subr.mxu0 0.0
    %704 = vmatpush1.xpose.msra.mxu0 0.0
    %705 = vmatprep.subr.mxu0 0.0
    %706 = vmatpush1.xpose.msra.mxu0 0.0
    %707 = vmatprep.subr.mxu0 0.0
    %708 = vmatpush1.xpose.msra.mxu0 0.0
    %709 = vmatprep.subr.mxu0 0.0
    %710 = vmatpush1.xpose.msra.mxu0 0.0
    %711 = vmatprep.subr.mxu0 0.0
    %712 = vmatpush1.xpose.msra.mxu0 0.0
    %713 = vmatprep.subr.mxu0 0.0
    %714 = vmatpush1.xpose.msra.mxu0 0.0
    %715 = vmatprep.subr.mxu0 0.0
    %716 = vmatpush1.xpose.msra.mxu0 0.0
    %717 = vmatprep.subr.mxu0 0.0
    %718 = vmatpush1.xpose.msra.mxu0 0.0
    %719 = vmatprep.subr.mxu0 0.0
    %720 = vmatpush1.xpose.msra.mxu0 0.0
    %721 = vmatprep.subr.mxu0 0.0
    %722 = vmatpush1.xpose.msra.mxu0 0.0
    %723 = vmatprep.subr.mxu0 0.0
    %724 = vmatpush1.xpose.msra.mxu0 0.0
    %725 = vmatprep.subr.mxu0 0.0
    %726 = vmatpush1.xpose.msra.mxu0 0.0
    %727 = vmatprep.subr.mxu0 0.0
    %728 = vmatpush1.xpose.msra.mxu0 0.0
    %729 = vmatprep.subr.mxu0 0.0
    %730 = vmatpush1.xpose.msra.mxu0 %v697
    %731 = vmatprep.subr.mxu0 0.0
    %732 = vmatpush2.xpose.msra.mxu0 0.0
    %733 = vmatprep.subr.mxu0 0.0
    %734 = vmatpush2.xpose.msra.mxu0 0.0
    %735 = vmatprep.subr.mxu0 0.0
    %736 = vmatpush2.xpose.msra.mxu0 0.0
    %737 = vmatprep.subr.mxu0 0.0
    %738 = vmatpush2.xpose.msra.mxu0 0.0
    %739 = vmatprep.subr.mxu0 0.0
    %740 = vmatpush2.xpose.msra.mxu0 0.0
    %741 = vmatprep.subr.mxu0 0.0
    %742 = vmatpush2.xpose.msra.mxu0 0.0
    %743 = vmatprep.subr.mxu0 0.0
    %744 = vmatpush2.xpose.msra.mxu0 0.0
    %745 = vmatprep.subr.mxu0 0.0
    %746 = vmatpush2.xpose.msra.mxu0 0.0
    %747 = vmatprep.subr.mxu0 0.0
    %748 = vmatpush2.xpose.msra.mxu0 0.0
    %749 = vmatprep.subr.mxu0 0.0
    %750 = vmatpush2.xpose.msra.mxu0 0.0
    %751 = vmatprep.subr.mxu0 0.0
    %752 = vmatpush2.xpose.msra.mxu0 0.0
    %753 = vmatprep.subr.mxu0 0.0
    %754 = vmatpush2.xpose.msra.mxu0 0.0
    %755 = vmatprep.subr.mxu0 0.0
    %756 = vmatpush2.xpose.msra.mxu0 0.0
    %757 = vmatprep.subr.mxu0 0.0
    %758 = vmatpush2.xpose.msra.mxu0 0.0
    %759 = vmatprep.subr.mxu0 0.0
    %760 = vmatpush2.xpose.msra.mxu0 0.0
    %761 = vmatprep.subr.mxu0 0.0
    %762 = vmatpush2.xpose.msra.mxu0 0.0
    %763 = vmatprep.mubr.f32.mxu0 0.0
    %764 = vmatmul.mubr.f32.gmra.mxu0 %v694
    %v765 = vpop.f32.mrf.mxu0
    %v766 = vadd.f32 %v692, %v765
    %v767 = vpop.f32.mrf.mxu0
    %768 = vdwg.mxu0
    %vm769 = vcmask 57344
    %770 = vst.msk [vmem:[#allocation6] sm:$0x1] %vm769, %v766
    // Predicated region
    $region70: #{tpu_custom_call.1} parent=1 // pred_check
      _
    $region71: #{tpu_custom_call.1} parent=1 // pred_check_branch
      %772 = sbr.rel (0) target = $region73
    $region72: #{tpu_custom_call.1} parent=1 // pred_region
      %s774 = ssub.s32 16, 16
      %775 = vsyncadd [#allocation5], %s774
      %s777 = sshll.u32 [#allocation6], 4
      %s778 = int_to_ptr.vmem [resolvable:$true] %s777
      %780 = dma.vmem_to_hbm [thread:$0]  %s778, 16, %s16, [#allocation5]
    $region73: #{tpu_custom_call.1} parent=1 // pred_fallthru
      _
    // Predicated region
    $region74: #{tpu_custom_call.1} parent=1 // pred_check
      _
    $region75: #{tpu_custom_call.1} parent=1 // pred_check_branch
      %782 = sbr.rel (0) target = $region77
    $region76: #{tpu_custom_call.1} parent=1 // pred_region
      %783 = dma.done [#allocation5], 16
    $region77: #{tpu_custom_call.1} parent=1 // pred_fallthru
      _
    %784 = vsyncpa [#allocation4], 1
    %785 = vsyncpa [#allocation5], 1

</llo_original>
